<compile_context>
chip_gen: v6e
topology: v6e:2x2x1
jax: 0.10.0
libtpu: 0.0.40
codegen_flags: <defaults>
</compile_context>

<pallas_src>
import functools

import jax
import jax.numpy as jnp
from jax import lax
from jax.experimental import pallas as pl
from jax.experimental.pallas import tpu as pltpu

EPS = 1e-8
BCE_LOG_CLAMP = -100.0  # torch.nn.BCELoss clamps log terms at -100


def _scan_partial_kernel(blocks_per_split, block_b,
                         b_sm, anc_ref, nbr_ref,
                         logsum_ref, probsum_ref,
                         acc_log, acc_prob):
    i = pl.program_id(0)          # TensorCore split ("parallel")
    j = pl.program_id(1)          # batch block within this split ("arbitrary")

    @pl.when(j == 0)
    def _init():
        acc_log[...] = jnp.zeros_like(acc_log)
        acc_prob[...] = jnp.zeros_like(acc_prob)

    # Mask rows outside the true batch: the ragged last block and the fully
    # padded overhang blocks of the second split (whose fetch index is clamped
    # in the index_map).
    nominal_block = i * blocks_per_split + j
    row0 = nominal_block * block_b
    rows = row0 + lax.broadcasted_iota(jnp.int32, (block_b, 1), 0)
    valid = rows < b_sm[0]                                        # [block_b, 1]

    a = jnp.where(valid, anc_ref[...].astype(jnp.float32), 0.0)   # [block_b, n]
    p = jnp.where(valid, nbr_ref[...].astype(jnp.float32), 0.0)

    a_max = jnp.max(a, axis=1, keepdims=True)
    p_max = jnp.max(p, axis=1, keepdims=True)
    a_exp = jnp.exp(a - a_max)
    p_exp = jnp.exp(p - p_max)

    s_a = jnp.sum(a_exp, axis=1, keepdims=True)                   # [block_b, 1]
    s_p = jnp.sum(p_exp, axis=1, keepdims=True)
    s_ap = jnp.sum(a_exp * p_exp, axis=1, keepdims=True)          # row-wise <e^a, e^p>

    # log(similarity_i) without ever forming positives_prob (VPU mul + lane
    # reduce; deliberately not routed through the MXU).
    log_sim = jnp.log(s_ap) - jnp.log(s_a) - jnp.log(s_p)
    log_sim = jnp.maximum(log_sim, BCE_LOG_CLAMP)
    log_sim = jnp.where(valid, log_sim, 0.0)
    acc_log[...] += jnp.sum(log_sim, axis=0, keepdims=True)       # (1, 1)

    # anchors_prob via one per-row reciprocal + broadcast multiply; only its
    # batch-sum is needed (entropy term).  approx=False keeps exact parity with
    # the PyTorch softmax.
    a_prob = a_exp * pl.reciprocal(s_a, approx=False)
    a_prob = jnp.where(valid, a_prob, 0.0)
    acc_prob[...] += jnp.sum(a_prob, axis=0, keepdims=True)       # (1, n)

    # Store partials exactly once per split (coalesced finalize; v5e has one
    # vector-store slot, so no per-step partial stores).
    @pl.when(j == pl.num_programs(1) - 1)
    def _finalize():
        logsum_ref[0] = acc_log[...]
        probsum_ref[0] = acc_prob[...]


def _choose_block_b(b, n):
    # Keep one [block_b, n] f32 input block at <= ~2 MiB so double-buffered
    # anchor+neighbor blocks plus f32 intermediates stay well inside v7x's
    # 64 MiB VMEM (and the 32 MiB scoped limit requested below).
    cap = max(8, (2 * 1024 * 1024) // (4 * max(n, 1)))
    cap = min(cap, 2048)
    blk = min(cap, b)
    return max(8, ((blk + 7) // 8) * 8)


def scan_loss(anchors, neighbors, entropy_weight=2.0, block_b=None):
    """Returns (total_loss, consistency_loss, entropy_loss) as f32 scalars."""
    b, n = anchors.shape
    assert neighbors.shape == (b, n)

    if block_b is None:
        block_b = _choose_block_b(b, n)
    block_b = max(8, ((block_b + 7) // 8) * 8)

    total_blocks = pl.cdiv(b, block_b)
    n_splits = 2 if total_blocks > 1 else 1   # 2-way split -> both v7x TensorCores
    bps = pl.cdiv(total_blocks, n_splits)     # batch blocks per split
    last_block = total_blocks - 1

    def in_map(i, j, b_sm):
        # Clamp so overhang iterations of the second split re-read a valid block;
        # their rows are fully masked inside the kernel.
        return (jnp.minimum(i * bps + j, last_block), 0)

    def out_map(i, j, b_sm):
        return (i, 0, 0)

    kernel = functools.partial(_scan_partial_kernel, bps, block_b)

    logsum, probsum = pl.pallas_call(
        kernel,
        out_shape=(
            jax.ShapeDtypeStruct((n_splits, 1, 1), jnp.float32),   # sum log(sim) per split
            jax.ShapeDtypeStruct((n_splits, 1, n), jnp.float32),   # sum anchors_prob per split
        ),
        grid_spec=pltpu.PrefetchScalarGridSpec(
            num_scalar_prefetch=1,                                 # true batch size (SMEM)
            grid=(n_splits, bps),
            in_specs=[
                pl.BlockSpec((block_b, n), in_map),
                pl.BlockSpec((block_b, n), in_map),
            ],
            out_specs=(
                pl.BlockSpec((1, 1, 1), out_map),
                pl.BlockSpec((1, 1, n), out_map),
            ),
            scratch_shapes=[
                pltpu.VMEM((1, 1), jnp.float32),   # running sum of log(sim)
                pltpu.VMEM((1, n), jnp.float32),   # running sum of anchors_prob
            ],
        ),
        compiler_params=pltpu.CompilerParams(
            dimension_semantics=("parallel", "arbitrary"),
            vmem_limit_bytes=32 * 1024 * 1024,
        ),
    )(jnp.array([b], dtype=jnp.int32), anchors, neighbors)

    # O(num_classes) combine in plain JAX: BCE(sim, ones) mean, entropy of the
    # mean anchor probability, and the weighted total.  entropy_weight and 1/b
    # never enter the kernel, so no recompiles when they change.
    inv_b = jnp.float32(1.0 / b)
    consistency = -jnp.sum(logsum) * inv_b
    mean_prob = jnp.sum(probsum, axis=(0, 1)) * inv_b
    x_ = jnp.maximum(mean_prob, EPS)
    entropy_loss = -jnp.sum(x_ * jnp.log(x_))
    total = consistency - jnp.float32(entropy_weight) * entropy_loss
    return total, consistency, entropy_loss


def _scan_loss_ref(anchors, neighbors, entropy_weight=2.0):
    """Pure-JAX reference mirroring the PyTorch module (for correctness check)."""
    a_prob = jax.nn.softmax(anchors, axis=1)
    p_prob = jax.nn.softmax(neighbors, axis=1)
    sim = jnp.sum(a_prob * p_prob, axis=1)
    cons = -jnp.mean(jnp.maximum(jnp.log(sim), BCE_LOG_CLAMP))
    mean_prob = jnp.mean(a_prob, axis=0)
    x_ = jnp.maximum(mean_prob, EPS)
    ent = -jnp.sum(x_ * jnp.log(x_))
    return cons - entropy_weight * ent, cons, ent


if __name__ == "__main__":
    # SCANLoss has no learned parameters; entropy_weight=2.0 as in __init__.
    b, num_classes = 8, 32
    k_a, k_n = jax.random.split(jax.random.PRNGKey(0))
    anchors = jax.random.normal(k_a, (b, num_classes), dtype=jnp.float32)
    neighbors = jax.random.normal(k_n, (b, num_classes), dtype=jnp.float32)

    total, cons, ent = scan_loss(anchors, neighbors, entropy_weight=2.0)
    jax.block_until_ready((total, cons, ent))

    total_ref, cons_ref, ent_ref = _scan_loss_ref(anchors, neighbors, 2.0)
    assert jnp.allclose(total, total_ref, rtol=1e-5, atol=1e-5)
    assert jnp.allclose(cons, cons_ref, rtol=1e-5, atol=1e-5)
    assert jnp.allclose(ent, ent_ref, rtol=1e-5, atol=1e-5)

    # Second check exercising the tiled path: ragged batch blocks, masking, and
    # the 2-way "parallel" split across TensorCores.
    b2, n2 = 200, 10
    k_a2, k_n2 = jax.random.split(jax.random.PRNGKey(1))
    anchors2 = jax.random.normal(k_a2, (b2, n2), dtype=jnp.float32)
    neighbors2 = jax.random.normal(k_n2, (b2, n2), dtype=jnp.float32)
    total2, cons2, ent2 = scan_loss(anchors2, neighbors2, entropy_weight=2.0,
                                    block_b=32)
    jax.block_until_ready((total2, cons2, ent2))
    total2_ref, cons2_ref, ent2_ref = _scan_loss_ref(anchors2, neighbors2, 2.0)
    assert jnp.allclose(total2, total2_ref, rtol=1e-5, atol=1e-5)
    assert jnp.allclose(cons2, cons2_ref, rtol=1e-5, atol=1e-5)
    assert jnp.allclose(ent2, ent2_ref, rtol=1e-5, atol=1e-5)

    print("KERNEL_OK")
</pallas_src>

<mosaic_0001>
module attributes {stable_mosaic.version = 11 : i64} {
  func.func @_scan_partial_kernel(%arg0: i32, %arg1: i32, %arg2: memref<1xi32, #tpu.memory_space<smem>>, %arg3: memref<8x32xf32, #tpu.memory_space<vmem>>, %arg4: memref<8x32xf32, #tpu.memory_space<vmem>>, %arg5: memref<1x1x1xf32, #tpu.memory_space<vmem>>, %arg6: memref<1x1x32xf32, #tpu.memory_space<vmem>>, %arg7: memref<1x1xf32, #tpu.memory_space<vmem>>, %arg8: memref<1x32xf32, #tpu.memory_space<vmem>>) attributes {dimension_semantics = [#tpu.dimension_semantics<parallel>, #tpu.dimension_semantics<arbitrary>], iteration_bounds = array<i64: 1, 1>, scalar_prefetch = 1 : i64, scratch_operands = 2 : i64, tpu.core_type = #tpu.core_type<tc>, window_params = [{transform_indices = @transform_0, window_bounds = array<i64: 8, 32>}, {transform_indices = @transform_1, window_bounds = array<i64: 8, 32>}, {transform_indices = @transform_2, window_bounds = array<i64: 1, 1, 1>}, {transform_indices = @transform_3, window_bounds = array<i64: 1, 1, 32>}]} {
    %c0_i32 = arith.constant 0 : i32
    %0 = arith.cmpi eq, %arg1, %c0_i32 : i32
    %1 = arith.extui %0 : i1 to i32
    %c0_i32_0 = arith.constant 0 : i32
    %2 = arith.cmpi ne, %1, %c0_i32_0 : i32
    scf.if %2 {
      %cst_26 = arith.constant 0.000000e+00 : f32
      %68 = vector.broadcast %cst_26 : f32 to vector<1x1xf32>
      %c0_27 = arith.constant 0 : index
      %c0_28 = arith.constant 0 : index
      %69 = vector.load %arg7[%c0_27, %c0_28] : memref<1x1xf32, #tpu.memory_space<vmem>>, vector<1x1xf32>
      tpu.vector_store %arg7[%c0_27, %c0_28], %68 {strides = array<i32>} : memref<1x1xf32, #tpu.memory_space<vmem>>, vector<1x1xf32>,
      %cst_29 = arith.constant 0.000000e+00 : f32
      %70 = vector.broadcast %cst_29 : f32 to vector<1x32xf32>
      %c0_30 = arith.constant 0 : index
      %c0_31 = arith.constant 0 : index
      %71 = vector.load %arg8[%c0_30, %c0_31] : memref<1x32xf32, #tpu.memory_space<vmem>>, vector<1x32xf32>
      tpu.vector_store %arg8[%c0_30, %c0_31], %70 {strides = array<i32>} : memref<1x32xf32, #tpu.memory_space<vmem>>, vector<1x32xf32>,
    } else {
    }
    %c1_i32 = arith.constant 1 : i32
    %3 = arith.muli %arg0, %c1_i32 : i32
    %4 = arith.addi %3, %arg1 : i32
    %c8_i32 = arith.constant 8 : i32
    %5 = arith.muli %4, %c8_i32 : i32
    %6 = tpu.iota {dimensions = array<i32: 0>} : vector<8x1xi32>
    %7 = vector.broadcast %5 : i32 to vector<8x1xi32>
    %8 = arith.addi %7, %6 : vector<8x1xi32>
    %c0 = arith.constant 0 : index
    %9 = memref.load %arg2[%c0] : memref<1xi32, #tpu.memory_space<smem>>
    %10 = vector.broadcast %9 : i32 to vector<8x1xi32>
    %11 = arith.cmpi slt, %8, %10 : vector<8x1xi32>
    %c0_1 = arith.constant 0 : index
    %c0_2 = arith.constant 0 : index
    %12 = vector.load %arg3[%c0_1, %c0_2] : memref<8x32xf32, #tpu.memory_space<vmem>>, vector<8x32xf32>
    %cst = arith.constant 0.000000e+00 : f32
    %13 = vector.shape_cast %11 : vector<8x1xi1> to vector<8x1xi1>
    %14 = vector.broadcast %13 : vector<8x1xi1> to vector<8x32xi1>
    %15 = vector.broadcast %cst : f32 to vector<8x32xf32>
    %16 = arith.select %14, %12, %15 : vector<8x32xi1>, vector<8x32xf32>
    %c0_3 = arith.constant 0 : index
    %c0_4 = arith.constant 0 : index
    %17 = vector.load %arg4[%c0_3, %c0_4] : memref<8x32xf32, #tpu.memory_space<vmem>>, vector<8x32xf32>
    %cst_5 = arith.constant 0.000000e+00 : f32
    %18 = vector.shape_cast %11 : vector<8x1xi1> to vector<8x1xi1>
    %19 = vector.broadcast %18 : vector<8x1xi1> to vector<8x32xi1>
    %20 = vector.broadcast %cst_5 : f32 to vector<8x32xf32>
    %21 = arith.select %19, %17, %20 : vector<8x32xi1>, vector<8x32xf32>
    %cst_6 = arith.constant dense<0xFF800000> : vector<8xf32>
    %22 = vector.multi_reduction <maximumf>, %16, %cst_6 [1] : vector<8x32xf32> to vector<8xf32>
    %23 = vector.shape_cast %22 : vector<8xf32> to vector<8x1xf32>
    %cst_7 = arith.constant dense<0xFF800000> : vector<8xf32>
    %24 = vector.multi_reduction <maximumf>, %21, %cst_7 [1] : vector<8x32xf32> to vector<8xf32>
    %25 = vector.shape_cast %24 : vector<8xf32> to vector<8x1xf32>
    %26 = vector.broadcast %23 : vector<8x1xf32> to vector<8x32xf32>
    %27 = arith.subf %16, %26 : vector<8x32xf32>
    %28 = math.exp %27 : vector<8x32xf32>
    %29 = vector.broadcast %25 : vector<8x1xf32> to vector<8x32xf32>
    %30 = arith.subf %21, %29 : vector<8x32xf32>
    %31 = math.exp %30 : vector<8x32xf32>
    %cst_8 = arith.constant dense<0.000000e+00> : vector<8xf32>
    %32 = vector.multi_reduction <add>, %28, %cst_8 [1] : vector<8x32xf32> to vector<8xf32>
    %33 = vector.shape_cast %32 : vector<8xf32> to vector<8x1xf32>
    %cst_9 = arith.constant dense<0.000000e+00> : vector<8xf32>
    %34 = vector.multi_reduction <add>, %31, %cst_9 [1] : vector<8x32xf32> to vector<8xf32>
    %35 = vector.shape_cast %34 : vector<8xf32> to vector<8x1xf32>
    %36 = arith.mulf %28, %31 : vector<8x32xf32>
    %cst_10 = arith.constant dense<0.000000e+00> : vector<8xf32>
    %37 = vector.multi_reduction <add>, %36, %cst_10 [1] : vector<8x32xf32> to vector<8xf32>
    %38 = vector.shape_cast %37 : vector<8xf32> to vector<8x1xf32>
    %39 = math.log %38 : vector<8x1xf32>
    %40 = math.log %33 : vector<8x1xf32>
    %41 = arith.subf %39, %40 : vector<8x1xf32>
    %42 = math.log %35 : vector<8x1xf32>
    %43 = arith.subf %41, %42 : vector<8x1xf32>
    %cst_11 = arith.constant -1.000000e+02 : f32
    %44 = vector.broadcast %cst_11 : f32 to vector<8x1xf32>
    %45 = arith.maximumf %43, %44 : vector<8x1xf32>
    %cst_12 = arith.constant 0.000000e+00 : f32
    %46 = vector.broadcast %cst_12 : f32 to vector<8x1xf32>
    %47 = arith.select %11, %45, %46 : vector<8x1xi1>, vector<8x1xf32>
    %c0_13 = arith.constant 0 : index
    %c0_14 = arith.constant 0 : index
    %48 = vector.load %arg7[%c0_13, %c0_14] : memref<1x1xf32, #tpu.memory_space<vmem>>, vector<1x1xf32>
    %cst_15 = arith.constant dense<0.000000e+00> : vector<1xf32>
    %49 = vector.multi_reduction <add>, %47, %cst_15 [0] : vector<8x1xf32> to vector<1xf32>
    %50 = vector.shape_cast %49 : vector<1xf32> to vector<1x1xf32>
    %51 = arith.addf %48, %50 : vector<1x1xf32>
    %c0_16 = arith.constant 0 : index
    %c0_17 = arith.constant 0 : index
    %52 = vector.load %arg7[%c0_16, %c0_17] : memref<1x1xf32, #tpu.memory_space<vmem>>, vector<1x1xf32>
    tpu.vector_store %arg7[%c0_16, %c0_17], %51 {strides = array<i32>} : memref<1x1xf32, #tpu.memory_space<vmem>>, vector<1x1xf32>,
    %53 = tpu.reciprocal %33 : vector<8x1xf32> -> vector<8x1xf32>
    %54 = vector.broadcast %53 : vector<8x1xf32> to vector<8x32xf32>
    %55 = arith.mulf %28, %54 : vector<8x32xf32>
    %cst_18 = arith.constant 0.000000e+00 : f32
    %56 = vector.shape_cast %11 : vector<8x1xi1> to vector<8x1xi1>
    %57 = vector.broadcast %56 : vector<8x1xi1> to vector<8x32xi1>
    %58 = vector.broadcast %cst_18 : f32 to vector<8x32xf32>
    %59 = arith.select %57, %55, %58 : vector<8x32xi1>, vector<8x32xf32>
    %c0_19 = arith.constant 0 : index
    %c0_20 = arith.constant 0 : index
    %60 = vector.load %arg8[%c0_19, %c0_20] : memref<1x32xf32, #tpu.memory_space<vmem>>, vector<1x32xf32>
    %cst_21 = arith.constant dense<0.000000e+00> : vector<32xf32>
    %61 = vector.multi_reduction <add>, %59, %cst_21 [0] : vector<8x32xf32> to vector<32xf32>
    %62 = vector.shape_cast %61 : vector<32xf32> to vector<1x32xf32>
    %63 = arith.addf %60, %62 : vector<1x32xf32>
    %c0_22 = arith.constant 0 : index
    %c0_23 = arith.constant 0 : index
    %64 = vector.load %arg8[%c0_22, %c0_23] : memref<1x32xf32, #tpu.memory_space<vmem>>, vector<1x32xf32>
    tpu.vector_store %arg8[%c0_22, %c0_23], %63 {strides = array<i32>} : memref<1x32xf32, #tpu.memory_space<vmem>>, vector<1x32xf32>,
    %c0_i32_24 = arith.constant 0 : i32
    %65 = arith.cmpi eq, %arg1, %c0_i32_24 : i32
    %66 = arith.extui %65 : i1 to i32
    %c0_i32_25 = arith.constant 0 : i32
    %67 = arith.cmpi ne, %66, %c0_i32_25 : i32
    scf.if %67 {
      %c0_26 = arith.constant 0 : index
      %c0_27 = arith.constant 0 : index
      %68 = vector.load %arg7[%c0_26, %c0_27] : memref<1x1xf32, #tpu.memory_space<vmem>>, vector<1x1xf32>
      %c0_28 = arith.constant 0 : index
      %c0_29 = arith.constant 0 : index
      %c0_30 = arith.constant 0 : index
      %69 = vector.load %arg5[%c0_28, %c0_29, %c0_30] : memref<1x1x1xf32, #tpu.memory_space<vmem>>, vector<1x1x1xf32>
      %70 = vector.shape_cast %69 : vector<1x1x1xf32> to vector<1x1xf32>
      %71 = vector.shape_cast %68 : vector<1x1xf32> to vector<1x1x1xf32>
      tpu.vector_store %arg5[%c0_28, %c0_29, %c0_30], %71 {strides = array<i32>} : memref<1x1x1xf32, #tpu.memory_space<vmem>>, vector<1x1x1xf32>,
      %c0_31 = arith.constant 0 : index
      %c0_32 = arith.constant 0 : index
      %72 = vector.load %arg8[%c0_31, %c0_32] : memref<1x32xf32, #tpu.memory_space<vmem>>, vector<1x32xf32>
      %c0_33 = arith.constant 0 : index
      %c0_34 = arith.constant 0 : index
      %c0_35 = arith.constant 0 : index
      %73 = vector.load %arg6[%c0_33, %c0_34, %c0_35] : memref<1x1x32xf32, #tpu.memory_space<vmem>>, vector<1x1x32xf32>
      %74 = vector.shape_cast %73 : vector<1x1x32xf32> to vector<1x32xf32>
      %75 = vector.shape_cast %72 : vector<1x32xf32> to vector<1x1x32xf32>
      tpu.vector_store %arg6[%c0_33, %c0_34, %c0_35], %75 {strides = array<i32>} : memref<1x1x32xf32, #tpu.memory_space<vmem>>, vector<1x1x32xf32>,
    } else {
    }
    return
  }
  func.func @transform_0(%arg0: i32, %arg1: i32, %arg2: memref<1xi32, #tpu.memory_space<smem>>) -> (i32, i32) {
    %c1_i32 = arith.constant 1 : i32
    %0 = arith.muli %arg0, %c1_i32 : i32
    %1 = arith.addi %0, %arg1 : i32
    %c0_i32 = arith.constant 0 : i32
    %2 = arith.minsi %1, %c0_i32 : i32
    %c0_i32_0 = arith.constant 0 : i32
    %c0_i32_1 = arith.constant 0 : i32
    return %2, %c0_i32_0 : i32, i32
  }
  func.func @transform_1(%arg0: i32, %arg1: i32, %arg2: memref<1xi32, #tpu.memory_space<smem>>) -> (i32, i32) {
    %c1_i32 = arith.constant 1 : i32
    %0 = arith.muli %arg0, %c1_i32 : i32
    %1 = arith.addi %0, %arg1 : i32
    %c0_i32 = arith.constant 0 : i32
    %2 = arith.minsi %1, %c0_i32 : i32
    %c0_i32_0 = arith.constant 0 : i32
    %c0_i32_1 = arith.constant 0 : i32
    return %2, %c0_i32_0 : i32, i32
  }
  func.func @transform_2(%arg0: i32, %arg1: i32, %arg2: memref<1xi32, #tpu.memory_space<smem>>) -> (i32, i32, i32) {
    %c0_i32 = arith.constant 0 : i32
    %c0_i32_0 = arith.constant 0 : i32
    %c0_i32_1 = arith.constant 0 : i32
    return %arg0, %c0_i32, %c0_i32_0 : i32, i32, i32
  }
  func.func @transform_3(%arg0: i32, %arg1: i32, %arg2: memref<1xi32, #tpu.memory_space<smem>>) -> (i32, i32, i32) {
    %c0_i32 = arith.constant 0 : i32
    %c0_i32_0 = arith.constant 0 : i32
    %c0_i32_1 = arith.constant 0 : i32
    return %arg0, %c0_i32, %c0_i32_0 : i32, i32, i32
  }
}

</mosaic_0001>

<llo_original>
// kernel: tpu_custom_call.1
$region0: #{tpu_custom_call.1}
  #allocation0 [shape = 'u32[]', space=smem, size = 0x4, offset = 0x4, fixed_abs, tag = 'smem constant byte address 0x4 - core index']
  #allocation1 [shape = 'u32[144,128]{1,0:T(1,128)}', space=vmem, size = 0x12000, scoped, tag = 'internal scratch']
  #allocation2 [shape = 'f32[1,1]{1,0:T(1,128)}', space=vmem, size = 0x200, scoped, tag = 'scratch operand']
  #allocation3 [shape = 'f32[1,32]{1,0:T(1,128)}', space=vmem, size = 0x200, scoped, tag = 'scratch operand']
  #allocation4 [shape = 's32[1]{0}', space=sflag, size = 0x4, scoped, tag = 'scoped memory for tpu_custom_call.1']
  #allocation5 [shape = 's32[1]{0:T(128)S(6)}', space=smem, size = 0x200, scoped, tag = 'prefetched SMEM operand 0']
  %s0 = inlined_call_operand.<no memory space> [shape: s32[1], index: 0, kind: input, shape index: {}]
  %s1 = inlined_call_operand.hbm [shape: f32[8,32], index: 1, kind: input, shape index: {}]
  %s2 = inlined_call_operand.hbm [shape: f32[8,32], index: 2, kind: input, shape index: {}]
  %s3 = inlined_call_operand.hbm [shape: f32[1,1,1], index: 3, kind: output, shape index: {0}]
  %s4 = inlined_call_operand.hbm [shape: f32[1,1,32], index: 4, kind: output, shape index: {1}]
  %5 = xla_tuple %s3, %s4
  %s6 = sld [smem:[#allocation0]]
  $region42: #{tpu_custom_call.1} parent=0
    _
  %s8 = ssub.s32 1, %s6
  %s9 = scalar_select 0, %s8, %s6
  %10 = sst [smem:[#allocation5]] %s0
  $region1: #{tpu_custom_call.1} parent=0
    #allocation6 [shape = 'u8[4096]{0}', space=vmem, size = 0x1000, scoped, tag = 'input window, operand 1, single buffered']
    #allocation7 [shape = 's32[1]{0}', space=sflag, size = 0x4, scoped, tag = 'scoped memory for tpu_custom_call.1']
    #allocation8 [shape = 's32[1]{0}', space=sflag, size = 0x4, scoped, tag = 'scoped memory for tpu_custom_call.1']
    #allocation9 [shape = 'u8[4096]{0}', space=vmem, size = 0x1000, scoped, tag = 'input window, operand 2, single buffered']
    #allocation10 [shape = 's32[1]{0}', space=sflag, size = 0x4, scoped, tag = 'scoped memory for tpu_custom_call.1']
    #allocation11 [shape = 'u8[512]{0}', space=vmem, size = 0x400, scoped, tag = 'output window, operand 0, single buffered']
    #allocation12 [shape = 'u8[512]{0}', space=vmem, size = 0x400, scoped, tag = 'output window, operand 1, single buffered']
    #allocation13 [shape = 's32[1]{0}', space=sflag, size = 0x4, scoped, tag = 'scoped memory for tpu_custom_call.1']
    %11 = vsyncpa [#allocation7], 0
    %12 = vsyncpa [#allocation10], 0
    %13 = vsyncpa [#allocation8], 0
    %14 = vsyncpa [#allocation13], 0
    // Predicated region
    $region2: #{tpu_custom_call.1} parent=1 // pred_check
      _
    $region3: #{tpu_custom_call.1} parent=1 // pred_check_branch
      %16 = sbr.rel (0) target = $region5
    $region4: #{tpu_custom_call.1} parent=1 // pred_region
      %s17 = sadd.s32 0, 0
      %p18 = scmp.lt.s32.totalorder %s17, 0
      %s19 = scalar_select %p18, %s17, 0
      %s21 = ssub.s32 128, 128
      %22 = vsyncadd [#allocation7], %s21
      %s23 = smul.addr %s19, 128
      %s24 = scalar_lea.hbm %s1, %s23
      %s26 = sshll.u32 [#allocation6], 4
      %s27 = int_to_ptr.vmem [resolvable:$true] %s26
      %29 = dma.hbm_to_vmem [thread:$0]  %s24, 128, %s27, [#allocation7]
    $region5: #{tpu_custom_call.1} parent=1 // pred_fallthru
      _
    // Predicated region
    $region6: #{tpu_custom_call.1} parent=1 // pred_check
      _
    $region7: #{tpu_custom_call.1} parent=1 // pred_check_branch
      %31 = sbr.rel (0) target = $region9
    $region8: #{tpu_custom_call.1} parent=1 // pred_region
      %s32 = sadd.s32 0, 0
      %p33 = scmp.lt.s32.totalorder %s32, 0
      %s34 = scalar_select %p33, %s32, 0
      %s36 = ssub.s32 128, 128
      %37 = vsyncadd [#allocation10], %s36
      %s38 = smul.addr %s34, 128
      %s39 = scalar_lea.hbm %s2, %s38
      %s41 = sshll.u32 [#allocation9], 4
      %s42 = int_to_ptr.vmem [resolvable:$true] %s41
      %44 = dma.hbm_to_vmem [thread:$0]  %s39, 128, %s42, [#allocation10]
    $region9: #{tpu_custom_call.1} parent=1 // pred_fallthru
      _
    // Predicated region
    $region10: #{tpu_custom_call.1} parent=1 // pred_check
      _
    $region11: #{tpu_custom_call.1} parent=1 // pred_check_branch
      %46 = sbr.rel (0) target = $region13
    $region12: #{tpu_custom_call.1} parent=1 // pred_region
      %47 = dma.done [#allocation7], 128
    $region13: #{tpu_custom_call.1} parent=1 // pred_fallthru
      _
    // Predicated region
    $region14: #{tpu_custom_call.1} parent=1 // pred_check
      _
    $region15: #{tpu_custom_call.1} parent=1 // pred_check_branch
      %49 = sbr.rel (0) target = $region17
    $region16: #{tpu_custom_call.1} parent=1 // pred_region
      %50 = dma.done [#allocation10], 128
    $region17: #{tpu_custom_call.1} parent=1 // pred_fallthru
      _
    %s51 = sadd.s32 0, 0
    %p52 = scmp.lt.s32.totalorder %s51, 0
    %s53 = scalar_select %p52, %s51, 0
    %s54 = sadd.s32 0, 0
    %p55 = scmp.lt.s32.totalorder %s54, 0
    %s56 = scalar_select %p55, %s54, 0
    %p57 = scmp.eq.s32.totalorder 0, 0
    // Predicated region
    $region18: #{tpu_custom_call.1} parent=1 // pred_check
      %p58 = pneg %p57
    $region19: #{tpu_custom_call.1} parent=1 // pred_check_branch
      %60 = sbr.rel (%p58) target = $region21
    $region20: #{tpu_custom_call.1} parent=1 // pred_region
      %vm61 = vcmask 0
      %62 = vst.msk [vmem:[#allocation2] sm:$0x1] %vm61, 0.0
      %vm63 = vcmask 253952
      %64 = vst.msk [vmem:[#allocation3] sm:$0x1] %vm63, 0.0
    $region21: #{tpu_custom_call.1} parent=1 // pred_fallthru
      _
    %s65 = sadd.s32 0, 0
    %s66 = smul.u32 %s65, 8
    %v67 = vlaneseq
    %v68 = vshrl.u32 %v67, 7
    %v69 = vstv %s66
    %v70 = vadd.s32 %v69, %v68
    %s71 = sld [smem:[#allocation5]]
    %v72 = vstv %s71
    %vm73 = vcmp.lt.s32.totalorder %v70, %v72
    %v74 = vld [vmem:[#allocation6] sm:$0xff]
    %v75 = vsel %vm73, 1, 0
    %vm76 = vcmp.eq.s32.totalorder %v75, 1
    %v77 = vsel %vm76, %v74, 0.0
    %v78 = vld [vmem:[#allocation9] sm:$0xff]
    %v79 = vsel %vm76, %v78, 0.0
    %vm80 = vcmask 261120
    %v81 = vsel %vm80, %v77, -inf
    %82 = vmax.xlane.f32.xlu0 %v81
    %v83 = vpop.xlane.xlu0 %82
    %v84 = vsel %vm80, %v79, -inf
    %85 = vmax.xlane.f32.xlu0 %v84
    %v86 = vpop.xlane.xlu0 %85
    %v87 = vsub.f32 %v77, %v83
    %v88 = vmul.f32 %v87, 1.442695
    %v89 = vpow.pop %v88
    %v90 = vsub.f32 %v79, %v86
    %v91 = vmul.f32 %v90, 1.442695
    %v92 = vpow.pop %v91
    %v93 = vsel %vm80, %v89, 0.0
    %94 = vadd.xlane.f32.xlu0 %v93
    %v95 = vpop.xlane.xlu0 %94
    %v96 = vsel %vm80, %v92, 0.0
    %97 = vadd.xlane.f32.xlu0 %v96
    %v98 = vpop.xlane.xlu0 %97
    %v99 = vmul.f32 %v89, %v92
    %v100 = vsel %vm80, %v99, 0.0
    %101 = vadd.xlane.f32.xlu0 %v100
    %v102 = vpop.xlane.xlu0 %101
    %v103 = vlog2.pop %v102
    %v104 = vmul.f32 %v103, 0.6931472
    %v105 = vlog2.pop %v95
    %v106 = vmul.f32 %v105, 0.6931472
    %v107 = vsub.f32 %v104, %v106
    %v108 = vlog2.pop %v98
    %v109 = vmul.f32 %v108, 0.6931472
    %v110 = vsub.f32 %v107, %v109
    %v111 = vmax.f32 %v110, -100.0
    %v112 = vsel %vm73, %v111, 0.0
    %v113 = vld [vmem:[#allocation2] sm:$0x1]
    %v114 = vrot.slane %v112, 4
    %v115 = vadd.f32 %v112, %v114
    %v116 = vrot.slane %v115, 2
    %v117 = vadd.f32 %v115, %v116
    %v118 = vrot.slane %v117, 1
    %v119 = vadd.f32 %v117, %v118
    %v120 = vadd.f32 %v113, %v119
    %vm121 = vcmask 0
    %122 = vst.msk [vmem:[#allocation2] sm:$0x1] %vm121, %v120
    %v123 = vrcp.pop %v95
    %v124 = vmul.f32 %v89, %v123
    %v125 = vsel %vm76, %v124, 0.0
    %v126 = vld [vmem:[#allocation3] sm:$0x1]
    %v127 = vsel %vm80, %v125, 0.0
    %v128 = vrot.slane %v127, 4
    %v129 = vadd.f32 %v127, %v128
    %v130 = vrot.slane %v129, 2
    %v131 = vadd.f32 %v129, %v130
    %v132 = vrot.slane %v131, 1
    %v133 = vadd.f32 %v131, %v132
    %v134 = vadd.f32 %v126, %v133
    %vm135 = vcmask 253952
    %136 = vst.msk [vmem:[#allocation3] sm:$0x1] %vm135, %v134
    // Predicated region
    $region22: #{tpu_custom_call.1} parent=1 // pred_check
      %p137 = pneg %p57
    $region23: #{tpu_custom_call.1} parent=1 // pred_check_branch
      %139 = sbr.rel (%p137) target = $region25
    $region24: #{tpu_custom_call.1} parent=1 // pred_region
      %v140 = vld [vmem:[#allocation2] sm:$0x1]
      %141 = vst.msk [vmem:[#allocation11] sm:$0x1] %vm121, %v140
      %v142 = vld [vmem:[#allocation3] sm:$0x1]
      %143 = vst.msk [vmem:[#allocation12] sm:$0x1] %vm135, %v142
    $region25: #{tpu_custom_call.1} parent=1 // pred_fallthru
      _
    // Predicated region
    $region26: #{tpu_custom_call.1} parent=1 // pred_check
      _
    $region27: #{tpu_custom_call.1} parent=1 // pred_check_branch
      %145 = sbr.rel (0) target = $region29
    $region28: #{tpu_custom_call.1} parent=1 // pred_region
      %s147 = ssub.s32 16, 16
      %148 = vsyncadd [#allocation8], %s147
      %s150 = sshll.u32 [#allocation11], 4
      %s151 = int_to_ptr.vmem [resolvable:$true] %s150
      %153 = dma.vmem_to_hbm [thread:$0]  %s151, 16, %s3, [#allocation8]
    $region29: #{tpu_custom_call.1} parent=1 // pred_fallthru
      _
    // Predicated region
    $region30: #{tpu_custom_call.1} parent=1 // pred_check
      _
    $region31: #{tpu_custom_call.1} parent=1 // pred_check_branch
      %155 = sbr.rel (0) target = $region33
    $region32: #{tpu_custom_call.1} parent=1 // pred_region
      %s157 = ssub.s32 16, 16
      %158 = vsyncadd [#allocation13], %s157
      %s160 = sshll.u32 [#allocation12], 4
      %s161 = int_to_ptr.vmem [resolvable:$true] %s160
      %163 = dma.vmem_to_hbm [thread:$0]  %s161, 16, %s4, [#allocation13]
    $region33: #{tpu_custom_call.1} parent=1 // pred_fallthru
      _
    // Predicated region
    $region34: #{tpu_custom_call.1} parent=1 // pred_check
      _
    $region35: #{tpu_custom_call.1} parent=1 // pred_check_branch
      %165 = sbr.rel (0) target = $region37
    $region36: #{tpu_custom_call.1} parent=1 // pred_region
      %166 = dma.done [#allocation8], 16
    $region37: #{tpu_custom_call.1} parent=1 // pred_fallthru
      _
    // Predicated region
    $region38: #{tpu_custom_call.1} parent=1 // pred_check
      _
    $region39: #{tpu_custom_call.1} parent=1 // pred_check_branch
      %168 = sbr.rel (0) target = $region41
    $region40: #{tpu_custom_call.1} parent=1 // pred_region
      %169 = dma.done [#allocation13], 16
    $region41: #{tpu_custom_call.1} parent=1 // pred_fallthru
      _
    %170 = vsyncpa [#allocation7], 1
    %171 = vsyncpa [#allocation10], 1
    %172 = vsyncpa [#allocation8], 1
    %173 = vsyncpa [#allocation13], 1

</llo_original>
